<compile_context>
chip_gen: v5e
topology: v5e:2x2
jax: 0.10.0
libtpu: 0.0.40
codegen_flags: <defaults>
</compile_context>

<pallas_src>
import functools

import jax
import jax.numpy as jnp
from jax.experimental import pallas as pl
from jax.experimental.pallas import tpu as pltpu

LANE = 128


def _round_up(v, m):
    return (v + m - 1) // m * m


def _pad2(a, rows, cols):
    r, c = a.shape
    return jnp.pad(a, ((0, rows - r), (0, cols - c)))


def _ln_stats(x, d_real):
    """Mean / variance over the first d_real columns of a lane-padded activation.

    Requires the padded columns of x to be exactly zero (guaranteed by the
    zero-padded weight columns / biases feeding each LN).
    """
    d_pad = x.shape[-1]
    if d_real == d_pad:
        mu = jnp.mean(x, axis=-1, keepdims=True)
        xc = x - mu
        var = jnp.mean(xc * xc, axis=-1, keepdims=True)
    else:
        inv_n = 1.0 / d_real
        mask = (jax.lax.broadcasted_iota(jnp.int32, (1, d_pad), 1) < d_real).astype(x.dtype)
        mu = jnp.sum(x, axis=-1, keepdims=True) * inv_n          # padded cols are zero
        xc = (x - mu) * mask
        var = jnp.sum(xc * xc, axis=-1, keepdims=True) * inv_n
    return mu, var


def _layernorm_normalize(x, d_real, eps=1e-5):
    """Normalize-only LayerNorm (affine folded into the next Linear offline)."""
    mu, var = _ln_stats(x, d_real)
    return (x - mu) * jax.lax.rsqrt(var + eps)


def _make_kernel(hidden_dims):
    num_blocks = len(hidden_dims) - 1

    def kernel(*refs):
        out_ref = refs[-1]
        h = refs[0][...].astype(jnp.bfloat16)                   # (TILE_B, in_size), unpadded K
        idx = 1

        # input Linear -> LayerNorm (affine kept: ReLU follows) -> ReLU
        w_in = refs[idx][...]; b_in = refs[idx + 1][...]
        g_in = refs[idx + 2][...]; be_in = refs[idx + 3][...]
        idx += 4
        h = jnp.dot(h, w_in, preferred_element_type=jnp.float32) + b_in
        h = _layernorm_normalize(h, hidden_dims[0]) * g_in + be_in
        h = jnp.maximum(h, 0.0).astype(jnp.bfloat16)             # bf16 fused into producer

        # hidden blocks: Linear -> ReLU -> fused attention -> LayerNorm (normalize-only)
        for l in range(num_blocks):
            w_l = refs[idx][...]; b_l = refs[idx + 1][...]
            w_vo = refs[idx + 2][...]; b_vo = refs[idx + 3][...]
            idx += 4

            h = jnp.dot(h, w_l, preferred_element_type=jnp.float32) + b_l
            h = jnp.maximum(h, 0.0).astype(jnp.bfloat16)
            # MultiheadAttention with seq_len == 1: softmax over a single score is 1,
            # so attn == out_proj(v_proj(h)); W_vo / b_vo were fused offline.
            h = jnp.dot(h, w_vo, preferred_element_type=jnp.float32) + b_vo
            # This block's gamma/beta were folded into the next Linear offline.
            h = _layernorm_normalize(h, hidden_dims[l + 1]).astype(jnp.bfloat16)

        # Dropout is identity (inference / eval mode).
        w_out = refs[idx][...]; b_out = refs[idx + 1][...]
        y = jnp.dot(h, w_out, preferred_element_type=jnp.float32) + b_out
        out_ref[...] = y.astype(out_ref.dtype)                   # bf16 store (half writeback)

    return kernel


def init_params(key, in_size, out_size, hidden_dims):
    """Deterministic parameter init (uniform, PyTorch-ish bounds), unpadded f32."""
    def lin(k, fan_in, fan_out):
        k1, k2 = jax.random.split(k)
        bound = 1.0 / float(fan_in) ** 0.5
        w = jax.random.uniform(k1, (fan_in, fan_out), jnp.float32, -bound, bound)  # (in, out)
        b = jax.random.uniform(k2, (1, fan_out), jnp.float32, -bound, bound)
        return w, b

    n_blocks = len(hidden_dims) - 1
    keys = jax.random.split(key, 2 + 3 * max(n_blocks, 1))
    kit = iter(keys)

    params = {}
    params["w_in"], params["b_in"] = lin(next(kit), in_size, hidden_dims[0])
    params["g_in"] = jnp.ones((1, hidden_dims[0]), jnp.float32)
    params["be_in"] = jnp.zeros((1, hidden_dims[0]), jnp.float32)

    params["blocks"] = []
    for i in range(n_blocks):
        d_in, d_out = hidden_dims[i], hidden_dims[i + 1]
        w_l, b_l = lin(next(kit), d_in, d_out)
        w_v, b_v = lin(next(kit), d_out, d_out)   # MHA in_proj V slice
        w_o, b_o = lin(next(kit), d_out, d_out)   # MHA out_proj
        g_n = jnp.ones((1, d_out), jnp.float32)
        be_n = jnp.zeros((1, d_out), jnp.float32)
        params["blocks"].append((w_l, b_l, w_v, b_v, w_o, b_o, g_n, be_n))

    params["w_out"], params["b_out"] = lin(next(kit), hidden_dims[-1], out_size)
    return params


def flatten_params(params, in_size, out_size, hidden_dims):
    """Fuse the V/out projections, fold block-LN affines into the following Linear,
    pad OUTPUT feature dims to 128 lanes (K of w_in stays at real in_size), and cast
    matmul weights to bf16.  Returns the flat tuple consumed by the kernel."""
    hid_p = [_round_up(d, LANE) for d in hidden_dims]
    out_p = _round_up(out_size, LANE)

    def fold(w, b, gamma, beta):
        # (gamma * n + beta) @ w + b  ==  n @ (gamma[:,None] * w) + (beta @ w + b)
        return w * gamma.reshape(-1, 1), beta.reshape(1, -1) @ w + b

    flat = [
        _pad2(params["w_in"], in_size, hid_p[0]).astype(jnp.bfloat16),   # K unpadded
        _pad2(params["b_in"], 1, hid_p[0]),
        _pad2(params["g_in"], 1, hid_p[0]),
        _pad2(params["be_in"], 1, hid_p[0]),
    ]
    prev_affine = None   # block LN affine folds into the *next* Linear
    for i, (w_l, b_l, w_v, b_v, w_o, b_o, g_n, be_n) in enumerate(params["blocks"]):
        d_ip, d_op = hid_p[i], hid_p[i + 1]
        if prev_affine is not None:
            w_l, b_l = fold(w_l, b_l, *prev_affine)
        w_vo = w_v @ w_o                 # fuse: attn(h) == (h @ W_v + b_v) @ W_o + b_o
        b_vo = b_v @ w_o + b_o
        flat += [
            _pad2(w_l, d_ip, d_op).astype(jnp.bfloat16),
            _pad2(b_l, 1, d_op),
            _pad2(w_vo, d_op, d_op).astype(jnp.bfloat16),
            _pad2(b_vo, 1, d_op),
        ]
        prev_affine = (g_n, be_n)

    w_out, b_out = params["w_out"], params["b_out"]
    if prev_affine is not None:          # fold the last block's LN into the output Linear
        w_out, b_out = fold(w_out, b_out, *prev_affine)
    flat += [
        _pad2(w_out, hid_p[-1], out_p).astype(jnp.bfloat16),
        _pad2(b_out, 1, out_p),
    ]
    return tuple(flat)


@functools.partial(jax.jit, static_argnames=("hidden_dims", "out_size", "tile_b"))
def tabular_transformer_forward(x, flat_params, *, hidden_dims, out_size, tile_b=1024):
    hidden_dims = tuple(int(d) for d in hidden_dims)
    batch, in_size = x.shape
    out_p = flat_params[-1].shape[1]

    # Batch tile: large (default 1024) to amortize per-step overhead, but halved
    # until the grid has >= 2 steps so ("parallel",) shards across v7x's 2 TCs.
    pad8 = _round_up(batch, 8)
    t = _round_up(min(int(tile_b), pad8), 8)
    if pad8 > 8:
        while t > 8 and pl.cdiv(pad8, t) < 2:
            t = _round_up(max(t // 2, 8), 8)
    pad_b = _round_up(pad8, t)
    grid = (pad_b // t,)

    # Input stays unpadded in the feature dim (block last dim == full array dim is
    # legal) and f32; the kernel casts to bf16.  Only the batch dim is padded.
    x_pad = jnp.pad(x, ((0, pad_b - batch), (0, 0))).astype(jnp.float32)

    in_specs = [pl.BlockSpec((t, in_size), lambda i: (i, 0))]
    in_specs += [pl.BlockSpec(p.shape, lambda i: (0, 0)) for p in flat_params]
    out_specs = pl.BlockSpec((t, out_p), lambda i: (i, 0))

    flops = sum(2 * pad_b * p.shape[0] * p.shape[1]
                for p in flat_params if p.ndim == 2 and p.shape[0] > 1)
    bytes_accessed = (x_pad.size * 4
                      + sum(p.size * p.dtype.itemsize for p in flat_params)
                      + pad_b * out_p * 2)
    cost = pl.CostEstimate(flops=flops,
                           transcendentals=pad_b * len(hidden_dims),
                           bytes_accessed=bytes_accessed)

    out_pad = pl.pallas_call(
        _make_kernel(hidden_dims),
        out_shape=jax.ShapeDtypeStruct((pad_b, out_p), jnp.bfloat16),
        grid=grid,
        in_specs=in_specs,
        out_specs=out_specs,
        compiler_params=pltpu.CompilerParams(
            dimension_semantics=("parallel",),
            vmem_limit_bytes=48 * 1024 * 1024),      # safe on v7x's 64 MiB VMEM
        cost_estimate=cost,
    )(x_pad, *flat_params)

    return out_pad[:batch, :out_size].astype(jnp.float32)


def reference_forward_mirror(x, flat_params, hidden_dims, out_size):
    """Pure-JAX mirror of the kernel math (same fused / folded / padded bf16 params)."""
    h = x.astype(jnp.bfloat16)
    w_in, b_in, g_in, be_in = flat_params[0:4]
    idx = 4
    h = jnp.dot(h, w_in, preferred_element_type=jnp.float32) + b_in
    h = _layernorm_normalize(h, hidden_dims[0]) * g_in + be_in
    h = jnp.maximum(h, 0.0).astype(jnp.bfloat16)
    for l in range(len(hidden_dims) - 1):
        w_l, b_l, w_vo, b_vo = flat_params[idx:idx + 4]; idx += 4
        h = jnp.dot(h, w_l, preferred_element_type=jnp.float32) + b_l
        h = jnp.maximum(h, 0.0).astype(jnp.bfloat16)
        h = jnp.dot(h, w_vo, preferred_element_type=jnp.float32) + b_vo
        h = _layernorm_normalize(h, hidden_dims[l + 1]).astype(jnp.bfloat16)
    w_out, b_out = flat_params[idx:idx + 2]
    y = jnp.dot(h, w_out, preferred_element_type=jnp.float32) + b_out
    return y[:, :out_size].astype(jnp.float32)


def reference_forward_f32(x, params, out_size):
    """Original unfused / unpadded / f32 forward (mirrors the PyTorch module, eval mode)."""
    def ln(h, g, b, eps=1e-5):
        mu = jnp.mean(h, axis=-1, keepdims=True)
        var = jnp.mean((h - mu) ** 2, axis=-1, keepdims=True)
        return (h - mu) * jax.lax.rsqrt(var + eps) * g + b

    h = x @ params["w_in"] + params["b_in"]
    h = ln(h, params["g_in"], params["be_in"])
    h = jnp.maximum(h, 0.0)
    for (w_l, b_l, w_v, b_v, w_o, b_o, g_n, be_n) in params["blocks"]:
        h = h @ w_l + b_l
        h = jnp.maximum(h, 0.0)
        h = (h @ w_v + b_v) @ w_o + b_o      # seq_len==1 MHA: softmax over one key == 1
        h = ln(h, g_n, be_n)
    y = h @ params["w_out"] + params["b_out"]
    return y[:, :out_size]


if __name__ == "__main__":
    IN_SIZE = 16
    OUT_SIZE = 4
    HIDDEN_DIMS = (32, 32, 32)   # num_layers = 3 -> 2 attention blocks
    NUM_HEADS = 4                # divides 32; inert because seq_len == 1

    key = jax.random.PRNGKey(0)
    k_x, k_p = jax.random.split(key)

    params = init_params(k_p, IN_SIZE, OUT_SIZE, HIDDEN_DIMS)
    flat_params = flatten_params(params, IN_SIZE, OUT_SIZE, HIDDEN_DIMS)

    # batch=8 -> single-tile grid; batch=40 -> multi-step grid (megacore path).
    for batch in (8, 40):
        x = jax.random.normal(jax.random.fold_in(k_x, batch), (batch, IN_SIZE), jnp.float32)

        y = tabular_transformer_forward(x, flat_params,
                                        hidden_dims=HIDDEN_DIMS, out_size=OUT_SIZE)
        jax.block_until_ready(y)
        assert y.shape == (batch, OUT_SIZE)

        # Tight check vs. a JAX mirror of the exact kernel math (same bf16 fused params).
        y_mirror = reference_forward_mirror(x, flat_params, HIDDEN_DIMS, OUT_SIZE)
        err_mirror = float(jnp.max(jnp.abs(y - y_mirror)))
        assert err_mirror < 2e-2, f"mismatch vs bf16 mirror (batch={batch}): {err_mirror}"

        # Loose check vs. the original unfused f32 math (bounds the bf16 cast and the
        # offline V/out-projection fusion + LN-affine folding).
        y_f32 = reference_forward_f32(x, params, OUT_SIZE)
        err_f32 = float(jnp.max(jnp.abs(y - y_f32)))
        tol = 5e-2 * float(jnp.max(jnp.abs(y_f32))) + 5e-2
        assert err_f32 < tol, f"mismatch vs f32 reference (batch={batch}): {err_f32} (tol {tol})"

    print("KERNEL_OK")
</pallas_src>

<mosaic_0001>
module attributes {stable_mosaic.version = 11 : i64} {
  func.func @kernel(%arg0: i32, %arg1: memref<8x16xf32, #tpu.memory_space<vmem>>, %arg2: memref<16x128xbf16, #tpu.memory_space<vmem>>, %arg3: memref<1x128xf32, #tpu.memory_space<vmem>>, %arg4: memref<1x128xf32, #tpu.memory_space<vmem>>, %arg5: memref<1x128xf32, #tpu.memory_space<vmem>>, %arg6: memref<128x128xbf16, #tpu.memory_space<vmem>>, %arg7: memref<1x128xf32, #tpu.memory_space<vmem>>, %arg8: memref<128x128xbf16, #tpu.memory_space<vmem>>, %arg9: memref<1x128xf32, #tpu.memory_space<vmem>>, %arg10: memref<128x128xbf16, #tpu.memory_space<vmem>>, %arg11: memref<1x128xf32, #tpu.memory_space<vmem>>, %arg12: memref<128x128xbf16, #tpu.memory_space<vmem>>, %arg13: memref<1x128xf32, #tpu.memory_space<vmem>>, %arg14: memref<128x128xbf16, #tpu.memory_space<vmem>>, %arg15: memref<1x128xf32, #tpu.memory_space<vmem>>, %arg16: memref<8x128xbf16, #tpu.memory_space<vmem>>) attributes {dimension_semantics = [#tpu.dimension_semantics<parallel>], iteration_bounds = array<i64: 1>, scalar_prefetch = 0 : i64, scratch_operands = 0 : i64, tpu.core_type = #tpu.core_type<tc>, window_params = [{transform_indices = @transform_0, window_bounds = array<i64: 8, 16>}, {pipeline_mode = #tpu.pipeline_mode<synchronous>, transform_indices = @transform_1, window_bounds = array<i64: 16, 128>}, {pipeline_mode = #tpu.pipeline_mode<synchronous>, transform_indices = @transform_2, window_bounds = array<i64: 1, 128>}, {pipeline_mode = #tpu.pipeline_mode<synchronous>, transform_indices = @transform_3, window_bounds = array<i64: 1, 128>}, {pipeline_mode = #tpu.pipeline_mode<synchronous>, transform_indices = @transform_4, window_bounds = array<i64: 1, 128>}, {pipeline_mode = #tpu.pipeline_mode<synchronous>, transform_indices = @transform_5, window_bounds = array<i64: 128, 128>}, {pipeline_mode = #tpu.pipeline_mode<synchronous>, transform_indices = @transform_6, window_bounds = array<i64: 1, 128>}, {pipeline_mode = #tpu.pipeline_mode<synchronous>, transform_indices = @transform_7, window_bounds = array<i64: 128, 128>}, {pipeline_mode = #tpu.pipeline_mode<synchronous>, transform_indices = @transform_8, window_bounds = array<i64: 1, 128>}, {pipeline_mode = #tpu.pipeline_mode<synchronous>, transform_indices = @transform_9, window_bounds = array<i64: 128, 128>}, {pipeline_mode = #tpu.pipeline_mode<synchronous>, transform_indices = @transform_10, window_bounds = array<i64: 1, 128>}, {pipeline_mode = #tpu.pipeline_mode<synchronous>, transform_indices = @transform_11, window_bounds = array<i64: 128, 128>}, {pipeline_mode = #tpu.pipeline_mode<synchronous>, transform_indices = @transform_12, window_bounds = array<i64: 1, 128>}, {pipeline_mode = #tpu.pipeline_mode<synchronous>, transform_indices = @transform_13, window_bounds = array<i64: 128, 128>}, {pipeline_mode = #tpu.pipeline_mode<synchronous>, transform_indices = @transform_14, window_bounds = array<i64: 1, 128>}, {transform_indices = @transform_15, window_bounds = array<i64: 8, 128>}]} {
    %c0 = arith.constant 0 : index
    %c0_0 = arith.constant 0 : index
    %0 = vector.load %arg1[%c0, %c0_0] : memref<8x16xf32, #tpu.memory_space<vmem>>, vector<8x16xf32>
    %1 = arith.truncf %0 : vector<8x16xf32> to vector<8x16xbf16>
    %c0_1 = arith.constant 0 : index
    %c0_2 = arith.constant 0 : index
    %2 = vector.load %arg2[%c0_1, %c0_2] : memref<16x128xbf16, #tpu.memory_space<vmem>>, vector<16x128xbf16>
    %c0_3 = arith.constant 0 : index
    %c0_4 = arith.constant 0 : index
    %3 = vector.load %arg3[%c0_3, %c0_4] : memref<1x128xf32, #tpu.memory_space<vmem>>, vector<1x128xf32>
    %c0_5 = arith.constant 0 : index
    %c0_6 = arith.constant 0 : index
    %4 = vector.load %arg4[%c0_5, %c0_6] : memref<1x128xf32, #tpu.memory_space<vmem>>, vector<1x128xf32>
    %c0_7 = arith.constant 0 : index
    %c0_8 = arith.constant 0 : index
    %5 = vector.load %arg5[%c0_7, %c0_8] : memref<1x128xf32, #tpu.memory_space<vmem>>, vector<1x128xf32>
    %cst = arith.constant dense<0.000000e+00> : vector<8x128xf32>
    %6 = tpu.matmul %1, %2, %cst {dimension_numbers = #tpu.dot_dimension_numbers<[1], [0], [0], [1], [0, 0, 1, 1], [], []>} : vector<8x16xbf16>, vector<16x128xbf16>, vector<8x128xf32> -> vector<8x128xf32>
    %7 = vector.broadcast %3 : vector<1x128xf32> to vector<8x128xf32>
    %8 = arith.addf %6, %7 : vector<8x128xf32>
    %9 = tpu.iota {dimensions = array<i32: 1>} : vector<1x128xi32>
    %c32_i32 = arith.constant 32 : i32
    %10 = vector.broadcast %c32_i32 : i32 to vector<1x128xi32>
    %11 = arith.cmpi slt, %9, %10 : vector<1x128xi32>
    %12 = arith.extui %11 : vector<1x128xi1> to vector<1x128xi32>
    %13 = arith.sitofp %12 : vector<1x128xi32> to vector<1x128xf32>
    %cst_9 = arith.constant dense<0.000000e+00> : vector<8xf32>
    %14 = vector.multi_reduction <add>, %8, %cst_9 [1] : vector<8x128xf32> to vector<8xf32>
    %15 = vector.shape_cast %14 : vector<8xf32> to vector<8x1xf32>
    %cst_10 = arith.constant 3.125000e-02 : f32
    %16 = vector.broadcast %cst_10 : f32 to vector<8x1xf32>
    %17 = arith.mulf %15, %16 : vector<8x1xf32>
    %18 = vector.broadcast %17 : vector<8x1xf32> to vector<8x128xf32>
    %19 = arith.subf %8, %18 : vector<8x128xf32>
    %20 = vector.broadcast %13 : vector<1x128xf32> to vector<8x128xf32>
    %21 = arith.mulf %19, %20 : vector<8x128xf32>
    %22 = arith.mulf %21, %21 : vector<8x128xf32>
    %cst_11 = arith.constant dense<0.000000e+00> : vector<8xf32>
    %23 = vector.multi_reduction <add>, %22, %cst_11 [1] : vector<8x128xf32> to vector<8xf32>
    %24 = vector.shape_cast %23 : vector<8xf32> to vector<8x1xf32>
    %cst_12 = arith.constant 3.125000e-02 : f32
    %25 = vector.broadcast %cst_12 : f32 to vector<8x1xf32>
    %26 = arith.mulf %24, %25 : vector<8x1xf32>
    %27 = vector.broadcast %17 : vector<8x1xf32> to vector<8x128xf32>
    %28 = arith.subf %8, %27 : vector<8x128xf32>
    %cst_13 = arith.constant 9.99999974E-6 : f32
    %29 = vector.broadcast %cst_13 : f32 to vector<8x1xf32>
    %30 = arith.addf %26, %29 : vector<8x1xf32>
    %31 = math.rsqrt %30 : vector<8x1xf32>
    %32 = vector.broadcast %31 : vector<8x1xf32> to vector<8x128xf32>
    %33 = arith.mulf %28, %32 : vector<8x128xf32>
    %34 = vector.broadcast %4 : vector<1x128xf32> to vector<8x128xf32>
    %35 = arith.mulf %33, %34 : vector<8x128xf32>
    %36 = vector.broadcast %5 : vector<1x128xf32> to vector<8x128xf32>
    %37 = arith.addf %35, %36 : vector<8x128xf32>
    %cst_14 = arith.constant 0.000000e+00 : f32
    %38 = vector.broadcast %cst_14 : f32 to vector<8x128xf32>
    %39 = arith.maximumf %37, %38 : vector<8x128xf32>
    %40 = arith.truncf %39 : vector<8x128xf32> to vector<8x128xbf16>
    %c0_15 = arith.constant 0 : index
    %c0_16 = arith.constant 0 : index
    %41 = vector.load %arg6[%c0_15, %c0_16] : memref<128x128xbf16, #tpu.memory_space<vmem>>, vector<128x128xbf16>
    %c0_17 = arith.constant 0 : index
    %c0_18 = arith.constant 0 : index
    %42 = vector.load %arg7[%c0_17, %c0_18] : memref<1x128xf32, #tpu.memory_space<vmem>>, vector<1x128xf32>
    %c0_19 = arith.constant 0 : index
    %c0_20 = arith.constant 0 : index
    %43 = vector.load %arg8[%c0_19, %c0_20] : memref<128x128xbf16, #tpu.memory_space<vmem>>, vector<128x128xbf16>
    %c0_21 = arith.constant 0 : index
    %c0_22 = arith.constant 0 : index
    %44 = vector.load %arg9[%c0_21, %c0_22] : memref<1x128xf32, #tpu.memory_space<vmem>>, vector<1x128xf32>
    %cst_23 = arith.constant dense<0.000000e+00> : vector<8x128xf32>
    %45 = tpu.matmul %40, %41, %cst_23 {dimension_numbers = #tpu.dot_dimension_numbers<[1], [0], [0], [1], [0, 0, 1, 1], [], []>} : vector<8x128xbf16>, vector<128x128xbf16>, vector<8x128xf32> -> vector<8x128xf32>
    %46 = vector.broadcast %42 : vector<1x128xf32> to vector<8x128xf32>
    %47 = arith.addf %45, %46 : vector<8x128xf32>
    %cst_24 = arith.constant 0.000000e+00 : f32
    %48 = vector.broadcast %cst_24 : f32 to vector<8x128xf32>
    %49 = arith.maximumf %47, %48 : vector<8x128xf32>
    %50 = arith.truncf %49 : vector<8x128xf32> to vector<8x128xbf16>
    %cst_25 = arith.constant dense<0.000000e+00> : vector<8x128xf32>
    %51 = tpu.matmul %50, %43, %cst_25 {dimension_numbers = #tpu.dot_dimension_numbers<[1], [0], [0], [1], [0, 0, 1, 1], [], []>} : vector<8x128xbf16>, vector<128x128xbf16>, vector<8x128xf32> -> vector<8x128xf32>
    %52 = vector.broadcast %44 : vector<1x128xf32> to vector<8x128xf32>
    %53 = arith.addf %51, %52 : vector<8x128xf32>
    %54 = tpu.iota {dimensions = array<i32: 1>} : vector<1x128xi32>
    %c32_i32_26 = arith.constant 32 : i32
    %55 = vector.broadcast %c32_i32_26 : i32 to vector<1x128xi32>
    %56 = arith.cmpi slt, %54, %55 : vector<1x128xi32>
    %57 = arith.extui %56 : vector<1x128xi1> to vector<1x128xi32>
    %58 = arith.sitofp %57 : vector<1x128xi32> to vector<1x128xf32>
    %cst_27 = arith.constant dense<0.000000e+00> : vector<8xf32>
    %59 = vector.multi_reduction <add>, %53, %cst_27 [1] : vector<8x128xf32> to vector<8xf32>
    %60 = vector.shape_cast %59 : vector<8xf32> to vector<8x1xf32>
    %cst_28 = arith.constant 3.125000e-02 : f32
    %61 = vector.broadcast %cst_28 : f32 to vector<8x1xf32>
    %62 = arith.mulf %60, %61 : vector<8x1xf32>
    %63 = vector.broadcast %62 : vector<8x1xf32> to vector<8x128xf32>
    %64 = arith.subf %53, %63 : vector<8x128xf32>
    %65 = vector.broadcast %58 : vector<1x128xf32> to vector<8x128xf32>
    %66 = arith.mulf %64, %65 : vector<8x128xf32>
    %67 = arith.mulf %66, %66 : vector<8x128xf32>
    %cst_29 = arith.constant dense<0.000000e+00> : vector<8xf32>
    %68 = vector.multi_reduction <add>, %67, %cst_29 [1] : vector<8x128xf32> to vector<8xf32>
    %69 = vector.shape_cast %68 : vector<8xf32> to vector<8x1xf32>
    %cst_30 = arith.constant 3.125000e-02 : f32
    %70 = vector.broadcast %cst_30 : f32 to vector<8x1xf32>
    %71 = arith.mulf %69, %70 : vector<8x1xf32>
    %72 = vector.broadcast %62 : vector<8x1xf32> to vector<8x128xf32>
    %73 = arith.subf %53, %72 : vector<8x128xf32>
    %cst_31 = arith.constant 9.99999974E-6 : f32
    %74 = vector.broadcast %cst_31 : f32 to vector<8x1xf32>
    %75 = arith.addf %71, %74 : vector<8x1xf32>
    %76 = math.rsqrt %75 : vector<8x1xf32>
    %77 = vector.broadcast %76 : vector<8x1xf32> to vector<8x128xf32>
    %78 = arith.mulf %73, %77 : vector<8x128xf32>
    %79 = arith.truncf %78 : vector<8x128xf32> to vector<8x128xbf16>
    %c0_32 = arith.constant 0 : index
    %c0_33 = arith.constant 0 : index
    %80 = vector.load %arg10[%c0_32, %c0_33] : memref<128x128xbf16, #tpu.memory_space<vmem>>, vector<128x128xbf16>
    %c0_34 = arith.constant 0 : index
    %c0_35 = arith.constant 0 : index
    %81 = vector.load %arg11[%c0_34, %c0_35] : memref<1x128xf32, #tpu.memory_space<vmem>>, vector<1x128xf32>
    %c0_36 = arith.constant 0 : index
    %c0_37 = arith.constant 0 : index
    %82 = vector.load %arg12[%c0_36, %c0_37] : memref<128x128xbf16, #tpu.memory_space<vmem>>, vector<128x128xbf16>
    %c0_38 = arith.constant 0 : index
    %c0_39 = arith.constant 0 : index
    %83 = vector.load %arg13[%c0_38, %c0_39] : memref<1x128xf32, #tpu.memory_space<vmem>>, vector<1x128xf32>
    %cst_40 = arith.constant dense<0.000000e+00> : vector<8x128xf32>
    %84 = tpu.matmul %79, %80, %cst_40 {dimension_numbers = #tpu.dot_dimension_numbers<[1], [0], [0], [1], [0, 0, 1, 1], [], []>} : vector<8x128xbf16>, vector<128x128xbf16>, vector<8x128xf32> -> vector<8x128xf32>
    %85 = vector.broadcast %81 : vector<1x128xf32> to vector<8x128xf32>
    %86 = arith.addf %84, %85 : vector<8x128xf32>
    %cst_41 = arith.constant 0.000000e+00 : f32
    %87 = vector.broadcast %cst_41 : f32 to vector<8x128xf32>
    %88 = arith.maximumf %86, %87 : vector<8x128xf32>
    %89 = arith.truncf %88 : vector<8x128xf32> to vector<8x128xbf16>
    %cst_42 = arith.constant dense<0.000000e+00> : vector<8x128xf32>
    %90 = tpu.matmul %89, %82, %cst_42 {dimension_numbers = #tpu.dot_dimension_numbers<[1], [0], [0], [1], [0, 0, 1, 1], [], []>} : vector<8x128xbf16>, vector<128x128xbf16>, vector<8x128xf32> -> vector<8x128xf32>
    %91 = vector.broadcast %83 : vector<1x128xf32> to vector<8x128xf32>
    %92 = arith.addf %90, %91 : vector<8x128xf32>
    %93 = tpu.iota {dimensions = array<i32: 1>} : vector<1x128xi32>
    %c32_i32_43 = arith.constant 32 : i32
    %94 = vector.broadcast %c32_i32_43 : i32 to vector<1x128xi32>
    %95 = arith.cmpi slt, %93, %94 : vector<1x128xi32>
    %96 = arith.extui %95 : vector<1x128xi1> to vector<1x128xi32>
    %97 = arith.sitofp %96 : vector<1x128xi32> to vector<1x128xf32>
    %cst_44 = arith.constant dense<0.000000e+00> : vector<8xf32>
    %98 = vector.multi_reduction <add>, %92, %cst_44 [1] : vector<8x128xf32> to vector<8xf32>
    %99 = vector.shape_cast %98 : vector<8xf32> to vector<8x1xf32>
    %cst_45 = arith.constant 3.125000e-02 : f32
    %100 = vector.broadcast %cst_45 : f32 to vector<8x1xf32>
    %101 = arith.mulf %99, %100 : vector<8x1xf32>
    %102 = vector.broadcast %101 : vector<8x1xf32> to vector<8x128xf32>
    %103 = arith.subf %92, %102 : vector<8x128xf32>
    %104 = vector.broadcast %97 : vector<1x128xf32> to vector<8x128xf32>
    %105 = arith.mulf %103, %104 : vector<8x128xf32>
    %106 = arith.mulf %105, %105 : vector<8x128xf32>
    %cst_46 = arith.constant dense<0.000000e+00> : vector<8xf32>
    %107 = vector.multi_reduction <add>, %106, %cst_46 [1] : vector<8x128xf32> to vector<8xf32>
    %108 = vector.shape_cast %107 : vector<8xf32> to vector<8x1xf32>
    %cst_47 = arith.constant 3.125000e-02 : f32
    %109 = vector.broadcast %cst_47 : f32 to vector<8x1xf32>
    %110 = arith.mulf %108, %109 : vector<8x1xf32>
    %111 = vector.broadcast %101 : vector<8x1xf32> to vector<8x128xf32>
    %112 = arith.subf %92, %111 : vector<8x128xf32>
    %cst_48 = arith.constant 9.99999974E-6 : f32
    %113 = vector.broadcast %cst_48 : f32 to vector<8x1xf32>
    %114 = arith.addf %110, %113 : vector<8x1xf32>
    %115 = math.rsqrt %114 : vector<8x1xf32>
    %116 = vector.broadcast %115 : vector<8x1xf32> to vector<8x128xf32>
    %117 = arith.mulf %112, %116 : vector<8x128xf32>
    %118 = arith.truncf %117 : vector<8x128xf32> to vector<8x128xbf16>
    %c0_49 = arith.constant 0 : index
    %c0_50 = arith.constant 0 : index
    %119 = vector.load %arg14[%c0_49, %c0_50] : memref<128x128xbf16, #tpu.memory_space<vmem>>, vector<128x128xbf16>
    %c0_51 = arith.constant 0 : index
    %c0_52 = arith.constant 0 : index
    %120 = vector.load %arg15[%c0_51, %c0_52] : memref<1x128xf32, #tpu.memory_space<vmem>>, vector<1x128xf32>
    %cst_53 = arith.constant dense<0.000000e+00> : vector<8x128xf32>
    %121 = tpu.matmul %118, %119, %cst_53 {dimension_numbers = #tpu.dot_dimension_numbers<[1], [0], [0], [1], [0, 0, 1, 1], [], []>} : vector<8x128xbf16>, vector<128x128xbf16>, vector<8x128xf32> -> vector<8x128xf32>
    %122 = vector.broadcast %120 : vector<1x128xf32> to vector<8x128xf32>
    %123 = arith.addf %121, %122 : vector<8x128xf32>
    %124 = arith.truncf %123 : vector<8x128xf32> to vector<8x128xbf16>
    %c0_54 = arith.constant 0 : index
    %c0_55 = arith.constant 0 : index
    %125 = vector.load %arg16[%c0_54, %c0_55] : memref<8x128xbf16, #tpu.memory_space<vmem>>, vector<8x128xbf16>
    tpu.vector_store %arg16[%c0_54, %c0_55], %124 {strides = array<i32>} : memref<8x128xbf16, #tpu.memory_space<vmem>>, vector<8x128xbf16>,
    return
  }
  func.func @transform_0(%arg0: i32) -> (i32, i32) {
    %c0_i32 = arith.constant 0 : i32
    %c0_i32_0 = arith.constant 0 : i32
    return %arg0, %c0_i32 : i32, i32
  }
  func.func @transform_1(%arg0: i32) -> (i32, i32) {
    %c0_i32 = arith.constant 0 : i32
    %c0_i32_0 = arith.constant 0 : i32
    %c0_i32_1 = arith.constant 0 : i32
    return %c0_i32, %c0_i32_0 : i32, i32
  }
  func.func @transform_2(%arg0: i32) -> (i32, i32) {
    %c0_i32 = arith.constant 0 : i32
    %c0_i32_0 = arith.constant 0 : i32
    %c0_i32_1 = arith.constant 0 : i32
    return %c0_i32, %c0_i32_0 : i32, i32
  }
  func.func @transform_3(%arg0: i32) -> (i32, i32) {
    %c0_i32 = arith.constant 0 : i32
    %c0_i32_0 = arith.constant 0 : i32
    %c0_i32_1 = arith.constant 0 : i32
    return %c0_i32, %c0_i32_0 : i32, i32
  }
  func.func @transform_4(%arg0: i32) -> (i32, i32) {
    %c0_i32 = arith.constant 0 : i32
    %c0_i32_0 = arith.constant 0 : i32
    %c0_i32_1 = arith.constant 0 : i32
    return %c0_i32, %c0_i32_0 : i32, i32
  }
  func.func @transform_5(%arg0: i32) -> (i32, i32) {
    %c0_i32 = arith.constant 0 : i32
    %c0_i32_0 = arith.constant 0 : i32
    %c0_i32_1 = arith.constant 0 : i32
    return %c0_i32, %c0_i32_0 : i32, i32
  }
  func.func @transform_6(%arg0: i32) -> (i32, i32) {
    %c0_i32 = arith.constant 0 : i32
    %c0_i32_0 = arith.constant 0 : i32
    %c0_i32_1 = arith.constant 0 : i32
    return %c0_i32, %c0_i32_0 : i32, i32
  }
  func.func @transform_7(%arg0: i32) -> (i32, i32) {
    %c0_i32 = arith.constant 0 : i32
    %c0_i32_0 = arith.constant 0 : i32
    %c0_i32_1 = arith.constant 0 : i32
    return %c0_i32, %c0_i32_0 : i32, i32
  }
  func.func @transform_8(%arg0: i32) -> (i32, i32) {
    %c0_i32 = arith.constant 0 : i32
    %c0_i32_0 = arith.constant 0 : i32
    %c0_i32_1 = arith.constant 0 : i32
    return %c0_i32, %c0_i32_0 : i32, i32
  }
  func.func @transform_9(%arg0: i32) -> (i32, i32) {
    %c0_i32 = arith.constant 0 : i32
    %c0_i32_0 = arith.constant 0 : i32
    %c0_i32_1 = arith.constant 0 : i32
    return %c0_i32, %c0_i32_0 : i32, i32
  }
  func.func @transform_10(%arg0: i32) -> (i32, i32) {
    %c0_i32 = arith.constant 0 : i32
    %c0_i32_0 = arith.constant 0 : i32
    %c0_i32_1 = arith.constant 0 : i32
    return %c0_i32, %c0_i32_0 : i32, i32
  }
  func.func @transform_11(%arg0: i32) -> (i32, i32) {
    %c0_i32 = arith.constant 0 : i32
    %c0_i32_0 = arith.constant 0 : i32
    %c0_i32_1 = arith.constant 0 : i32
    return %c0_i32, %c0_i32_0 : i32, i32
  }
  func.func @transform_12(%arg0: i32) -> (i32, i32) {
    %c0_i32 = arith.constant 0 : i32
    %c0_i32_0 = arith.constant 0 : i32
    %c0_i32_1 = arith.constant 0 : i32
    return %c0_i32, %c0_i32_0 : i32, i32
  }
  func.func @transform_13(%arg0: i32) -> (i32, i32) {
    %c0_i32 = arith.constant 0 : i32
    %c0_i32_0 = arith.constant 0 : i32
    %c0_i32_1 = arith.constant 0 : i32
    return %c0_i32, %c0_i32_0 : i32, i32
  }
  func.func @transform_14(%arg0: i32) -> (i32, i32) {
    %c0_i32 = arith.constant 0 : i32
    %c0_i32_0 = arith.constant 0 : i32
    %c0_i32_1 = arith.constant 0 : i32
    return %c0_i32, %c0_i32_0 : i32, i32
  }
  func.func @transform_15(%arg0: i32) -> (i32, i32) {
    %c0_i32 = arith.constant 0 : i32
    %c0_i32_0 = arith.constant 0 : i32
    return %arg0, %c0_i32 : i32, i32
  }
}

</mosaic_0001>

<llo_original>
// kernel: tabular_transformer_forward.1
$region0: #{tabular_transformer_forward.1}
  #allocation0 [shape = 'u32[]', space=smem, size = 0x4, offset = 0x4, fixed_abs, tag = 'smem constant byte address 0x4 - core index']
  #allocation1 [shape = 'u32[72,128]{1,0:T(1,128)}', space=vmem, size = 0x9000, scoped, tag = 'internal scratch']
  %s0 = inlined_call_operand.hbm [shape: f32[8,16], index: 0, kind: input, shape index: {}]
  %s1 = inlined_call_operand.hbm [shape: bf16[16,128], index: 1, kind: input, shape index: {}]
  %s2 = inlined_call_operand.vmem [shape: f32[1,128], index: 2, kind: input, shape index: {}]
  %s3 = inlined_call_operand.vmem [shape: f32[1,128], index: 3, kind: input, shape index: {}]
  %s4 = inlined_call_operand.vmem [shape: f32[1,128], index: 4, kind: input, shape index: {}]
  %s5 = inlined_call_operand.hbm [shape: bf16[128,128], index: 5, kind: input, shape index: {}]
  %s6 = inlined_call_operand.vmem [shape: f32[1,128], index: 6, kind: input, shape index: {}]
  %s7 = inlined_call_operand.hbm [shape: bf16[128,128], index: 7, kind: input, shape index: {}]
  %s8 = inlined_call_operand.vmem [shape: f32[1,128], index: 8, kind: input, shape index: {}]
  %s9 = inlined_call_operand.hbm [shape: bf16[128,128], index: 9, kind: input, shape index: {}]
  %s10 = inlined_call_operand.vmem [shape: f32[1,128], index: 10, kind: input, shape index: {}]
  %s11 = inlined_call_operand.hbm [shape: bf16[128,128], index: 11, kind: input, shape index: {}]
  %s12 = inlined_call_operand.vmem [shape: f32[1,128], index: 12, kind: input, shape index: {}]
  %s13 = inlined_call_operand.hbm [shape: bf16[128,128], index: 13, kind: input, shape index: {}]
  %s14 = inlined_call_operand.vmem [shape: f32[1,128], index: 14, kind: input, shape index: {}]
  %s15 = inlined_call_operand.vmem [shape: bf16[8,128], index: 15, kind: output, shape index: {}]
  %s16 = sld [smem:[#allocation0]]
  $region98: #{tabular_transformer_forward.1} parent=0
    _
  %s18 = ssub.s32 1, %s16
  %s19 = scalar_select 0, %s18, %s16
  $region1: #{tabular_transformer_forward.1} parent=0
    #allocation2 [shape = 'u8[4096]{0}', space=vmem, size = 0x1000, scoped, tag = 'input window, operand 0, single buffered']
    #allocation3 [shape = 's32[1]{0}', space=sflag, size = 0x4, scoped, tag = 'scoped memory for tabular_transformer_forward.1']
    #allocation4 [shape = 'u8[4096]{0}', space=vmem, size = 0x1000, scoped, tag = 'input window, operand 1, single buffered']
    #allocation5 [shape = 's32[1]{0}', space=sflag, size = 0x4, scoped, tag = 'scoped memory for tabular_transformer_forward.1']
    #allocation6 [shape = 'u8[32768]{0}', space=vmem, size = 0x8000, scoped, tag = 'input window, operand 5, single buffered']
    #allocation7 [shape = 'u8[32768]{0}', space=vmem, size = 0x8000, scoped, tag = 'input window, operand 7, single buffered']
    #allocation8 [shape = 's32[1]{0}', space=sflag, size = 0x4, scoped, tag = 'scoped memory for tabular_transformer_forward.1']
    #allocation9 [shape = 'u8[32768]{0}', space=vmem, size = 0x8000, scoped, tag = 'input window, operand 9, single buffered']
    #allocation10 [shape = 'u8[32768]{0}', space=vmem, size = 0x8000, scoped, tag = 'input window, operand 11, single buffered']
    #allocation11 [shape = 's32[1]{0}', space=sflag, size = 0x4, scoped, tag = 'scoped memory for tabular_transformer_forward.1']
    #allocation12 [shape = 'u8[32768]{0}', space=vmem, size = 0x8000, scoped, tag = 'input window, operand 13, single buffered']
    %20 = vsyncpa [#allocation3], 0
    %21 = vsyncpa [#allocation5], 0
    %22 = vsyncpa [#allocation8], 0
    %23 = vsyncpa [#allocation11], 0
    // Predicated region
    $region2: #{tabular_transformer_forward.1} parent=1 // pred_check
      _
    $region3: #{tabular_transformer_forward.1} parent=1 // pred_check_branch
      %25 = sbr.rel (0) target = $region5
    $region4: #{tabular_transformer_forward.1} parent=1 // pred_region
      %27 = vsyncadd [#allocation3], 0
      %s29 = sshll.u32 %s0, 4
      %s30 = int_to_ptr.hbm [resolvable:$true] %s29
      %s31 = sshll.u32 [#allocation2], 4
      %s32 = int_to_ptr.vmem [resolvable:$true] %s31
      %34 = dma.hbm_to_vmem [thread:$0]  %s30, 128, %s32, [#allocation3]
    $region5: #{tabular_transformer_forward.1} parent=1 // pred_fallthru
      _
    // Predicated region
    $region6: #{tabular_transformer_forward.1} parent=1 // pred_check
      _
    $region7: #{tabular_transformer_forward.1} parent=1 // pred_check_branch
      %36 = sbr.rel (0) target = $region9
    $region8: #{tabular_transformer_forward.1} parent=1 // pred_region
      %38 = vsyncadd [#allocation5], 0
      %s39 = sshll.u32 %s1, 4
      %s40 = int_to_ptr.hbm [resolvable:$true] %s39
      %s41 = sshll.u32 [#allocation4], 4
      %s42 = int_to_ptr.vmem [resolvable:$true] %s41
      %47 = dma.hbm_to_vmem [thread:$0]  %s40, 128, %s42, [#allocation5], 64, 64, 4
    $region9: #{tabular_transformer_forward.1} parent=1 // pred_fallthru
      _
    // Predicated region
    $region10: #{tabular_transformer_forward.1} parent=1 // pred_check
      _
    $region11: #{tabular_transformer_forward.1} parent=1 // pred_check_branch
      %49 = sbr.rel (0) target = $region13
    $region12: #{tabular_transformer_forward.1} parent=1 // pred_region
      _
    $region13: #{tabular_transformer_forward.1} parent=1 // pred_fallthru
      _
    // Predicated region
    $region14: #{tabular_transformer_forward.1} parent=1 // pred_check
      _
    $region15: #{tabular_transformer_forward.1} parent=1 // pred_check_branch
      %51 = sbr.rel (0) target = $region17
    $region16: #{tabular_transformer_forward.1} parent=1 // pred_region
      _
    $region17: #{tabular_transformer_forward.1} parent=1 // pred_fallthru
      _
    // Predicated region
    $region18: #{tabular_transformer_forward.1} parent=1 // pred_check
      _
    $region19: #{tabular_transformer_forward.1} parent=1 // pred_check_branch
      %53 = sbr.rel (0) target = $region21
    $region20: #{tabular_transformer_forward.1} parent=1 // pred_region
      _
    $region21: #{tabular_transformer_forward.1} parent=1 // pred_fallthru
      _
    // Predicated region
    $region22: #{tabular_transformer_forward.1} parent=1 // pred_check
      _
    $region23: #{tabular_transformer_forward.1} parent=1 // pred_check_branch
      %55 = sbr.rel (0) target = $region25
    $region24: #{tabular_transformer_forward.1} parent=1 // pred_region
      %57 = vsyncadd [#allocation5], 0
      %s58 = sshll.u32 %s5, 4
      %s59 = int_to_ptr.hbm [resolvable:$true] %s58
      %s60 = sshll.u32 [#allocation6], 4
      %s61 = int_to_ptr.vmem [resolvable:$true] %s60
      %66 = dma.hbm_to_vmem [thread:$0]  %s59, 1024, %s61, [#allocation5], 64, 64, 4
    $region25: #{tabular_transformer_forward.1} parent=1 // pred_fallthru
      _
    // Predicated region
    $region26: #{tabular_transformer_forward.1} parent=1 // pred_check
      _
    $region27: #{tabular_transformer_forward.1} parent=1 // pred_check_branch
      %68 = sbr.rel (0) target = $region29
    $region28: #{tabular_transformer_forward.1} parent=1 // pred_region
      _
    $region29: #{tabular_transformer_forward.1} parent=1 // pred_fallthru
      _
    // Predicated region
    $region30: #{tabular_transformer_forward.1} parent=1 // pred_check
      _
    $region31: #{tabular_transformer_forward.1} parent=1 // pred_check_branch
      %70 = sbr.rel (0) target = $region33
    $region32: #{tabular_transformer_forward.1} parent=1 // pred_region
      %72 = vsyncadd [#allocation8], 0
      %s73 = sshll.u32 %s7, 4
      %s74 = int_to_ptr.hbm [resolvable:$true] %s73
      %s75 = sshll.u32 [#allocation7], 4
      %s76 = int_to_ptr.vmem [resolvable:$true] %s75
      %81 = dma.hbm_to_vmem [thread:$0]  %s74, 1024, %s76, [#allocation8], 64, 64, 4
    $region33: #{tabular_transformer_forward.1} parent=1 // pred_fallthru
      _
    // Predicated region
    $region34: #{tabular_transformer_forward.1} parent=1 // pred_check
      _
    $region35: #{tabular_transformer_forward.1} parent=1 // pred_check_branch
      %83 = sbr.rel (0) target = $region37
    $region36: #{tabular_transformer_forward.1} parent=1 // pred_region
      _
    $region37: #{tabular_transformer_forward.1} parent=1 // pred_fallthru
      _
    // Predicated region
    $region38: #{tabular_transformer_forward.1} parent=1 // pred_check
      _
    $region39: #{tabular_transformer_forward.1} parent=1 // pred_check_branch
      %85 = sbr.rel (0) target = $region41
    $region40: #{tabular_transformer_forward.1} parent=1 // pred_region
      %87 = vsyncadd [#allocation8], 0
      %s88 = sshll.u32 %s9, 4
      %s89 = int_to_ptr.hbm [resolvable:$true] %s88
      %s90 = sshll.u32 [#allocation9], 4
      %s91 = int_to_ptr.vmem [resolvable:$true] %s90
      %96 = dma.hbm_to_vmem [thread:$0]  %s89, 1024, %s91, [#allocation8], 64, 64, 4
    $region41: #{tabular_transformer_forward.1} parent=1 // pred_fallthru
      _
    // Predicated region
    $region42: #{tabular_transformer_forward.1} parent=1 // pred_check
      _
    $region43: #{tabular_transformer_forward.1} parent=1 // pred_check_branch
      %98 = sbr.rel (0) target = $region45
    $region44: #{tabular_transformer_forward.1} parent=1 // pred_region
      _
    $region45: #{tabular_transformer_forward.1} parent=1 // pred_fallthru
      _
    // Predicated region
    $region46: #{tabular_transformer_forward.1} parent=1 // pred_check
      _
    $region47: #{tabular_transformer_forward.1} parent=1 // pred_check_branch
      %100 = sbr.rel (0) target = $region49
    $region48: #{tabular_transformer_forward.1} parent=1 // pred_region
      %102 = vsyncadd [#allocation11], 0
      %s103 = sshll.u32 %s11, 4
      %s104 = int_to_ptr.hbm [resolvable:$true] %s103
      %s105 = sshll.u32 [#allocation10], 4
      %s106 = int_to_ptr.vmem [resolvable:$true] %s105
      %111 = dma.hbm_to_vmem [thread:$0]  %s104, 1024, %s106, [#allocation11], 64, 64, 4
    $region49: #{tabular_transformer_forward.1} parent=1 // pred_fallthru
      _
    // Predicated region
    $region50: #{tabular_transformer_forward.1} parent=1 // pred_check
      _
    $region51: #{tabular_transformer_forward.1} parent=1 // pred_check_branch
      %113 = sbr.rel (0) target = $region53
    $region52: #{tabular_transformer_forward.1} parent=1 // pred_region
      _
    $region53: #{tabular_transformer_forward.1} parent=1 // pred_fallthru
      _
    // Predicated region
    $region54: #{tabular_transformer_forward.1} parent=1 // pred_check
      _
    $region55: #{tabular_transformer_forward.1} parent=1 // pred_check_branch
      %115 = sbr.rel (0) target = $region57
    $region56: #{tabular_transformer_forward.1} parent=1 // pred_region
      %117 = vsyncadd [#allocation11], 0
      %s118 = sshll.u32 %s13, 4
      %s119 = int_to_ptr.hbm [resolvable:$true] %s118
      %s120 = sshll.u32 [#allocation12], 4
      %s121 = int_to_ptr.vmem [resolvable:$true] %s120
      %126 = dma.hbm_to_vmem [thread:$0]  %s119, 1024, %s121, [#allocation11], 64, 64, 4
    $region57: #{tabular_transformer_forward.1} parent=1 // pred_fallthru
      _
    // Predicated region
    $region58: #{tabular_transformer_forward.1} parent=1 // pred_check
      _
    $region59: #{tabular_transformer_forward.1} parent=1 // pred_check_branch
      %128 = sbr.rel (0) target = $region61
    $region60: #{tabular_transformer_forward.1} parent=1 // pred_region
      _
    $region61: #{tabular_transformer_forward.1} parent=1 // pred_fallthru
      _
    // Predicated region
    $region62: #{tabular_transformer_forward.1} parent=1 // pred_check
      _
    $region63: #{tabular_transformer_forward.1} parent=1 // pred_check_branch
      %130 = sbr.rel (0) target = $region65
    $region64: #{tabular_transformer_forward.1} parent=1 // pred_region
      %132 = dma.done [#allocation3], 128
    $region65: #{tabular_transformer_forward.1} parent=1 // pred_fallthru
      _
    // Predicated region
    $region66: #{tabular_transformer_forward.1} parent=1 // pred_check
      _
    $region67: #{tabular_transformer_forward.1} parent=1 // pred_check_branch
      %134 = sbr.rel (0) target = $region69
    $region68: #{tabular_transformer_forward.1} parent=1 // pred_region
      %136 = dma.done [#allocation5], 128
    $region69: #{tabular_transformer_forward.1} parent=1 // pred_fallthru
      _
    // Predicated region
    $region70: #{tabular_transformer_forward.1} parent=1 // pred_check
      _
    $region71: #{tabular_transformer_forward.1} parent=1 // pred_check_branch
      %138 = sbr.rel (0) target = $region73
    $region72: #{tabular_transformer_forward.1} parent=1 // pred_region
      %140 = dma.done [#allocation5], 1024
    $region73: #{tabular_transformer_forward.1} parent=1 // pred_fallthru
      _
    // Predicated region
    $region74: #{tabular_transformer_forward.1} parent=1 // pred_check
      _
    $region75: #{tabular_transformer_forward.1} parent=1 // pred_check_branch
      %142 = sbr.rel (0) target = $region77
    $region76: #{tabular_transformer_forward.1} parent=1 // pred_region
      %144 = dma.done [#allocation8], 1024
    $region77: #{tabular_transformer_forward.1} parent=1 // pred_fallthru
      _
    // Predicated region
    $region78: #{tabular_transformer_forward.1} parent=1 // pred_check
      _
    $region79: #{tabular_transformer_forward.1} parent=1 // pred_check_branch
      %146 = sbr.rel (0) target = $region81
    $region80: #{tabular_transformer_forward.1} parent=1 // pred_region
      %148 = dma.done [#allocation8], 1024
    $region81: #{tabular_transformer_forward.1} parent=1 // pred_fallthru
      _
    // Predicated region
    $region82: #{tabular_transformer_forward.1} parent=1 // pred_check
      _
    $region83: #{tabular_transformer_forward.1} parent=1 // pred_check_branch
      %150 = sbr.rel (0) target = $region85
    $region84: #{tabular_transformer_forward.1} parent=1 // pred_region
      %152 = dma.done [#allocation11], 1024
    $region85: #{tabular_transformer_forward.1} parent=1 // pred_fallthru
      _
    // Predicated region
    $region86: #{tabular_transformer_forward.1} parent=1 // pred_check
      _
    $region87: #{tabular_transformer_forward.1} parent=1 // pred_check_branch
      %154 = sbr.rel (0) target = $region89
    $region88: #{tabular_transformer_forward.1} parent=1 // pred_region
      %156 = dma.done [#allocation11], 1024
    $region89: #{tabular_transformer_forward.1} parent=1 // pred_fallthru
      _
    %v158 = vld [vmem:[#allocation2] sm:$0xff]
    %v159 = vpack.c.bf16 %v158, %v158
    %v160 = vld [vmem:[#allocation4] sm:$0xf]
    %v161 = vld [vmem:[#allocation4 + $0x4] sm:$0xf]
    %v162 = vld [vmem:[%s2] sm:$0x1]
    %v163 = vld [vmem:[%s3] sm:$0x1]
    %v164 = vld [vmem:[%s4] sm:$0x1]
    %v166 = vperm.slane %v162, 0
    %v170 = vunpack.c.l.b16 %v160
    %v171 = vunpack.c.l.b16 %v161
    %v172 = vpack.c.b16 %v171, %v170
    %vm174 = vcmask 130048
    %v176 = vsel %vm174, %v159, 0
    %178 = vmatpush.bf16.msra.mxu0 0
    %179 = vmatpush.bf16.msra.mxu0 0
    %180 = vmatpush.bf16.msra.mxu0 0
    %181 = vmatpush.bf16.msra.mxu0 0
    %182 = vmatpush.bf16.msra.mxu0 0
    %183 = vmatpush.bf16.msra.mxu0 0
    %184 = vmatpush.bf16.msra.mxu0 0
    %185 = vmatpush.bf16.msra.mxu0 %v172
    %186 = vmatmul.bf16.gmra.mxu0 %v176
    %v187 = vpop.f32.mrf.mxu0
    %v188 = vadd.f32 %v166, %v187
    %v189 = vpop.f32.mrf.mxu0
    %190 = vdwg.mxu0
    %v191 = vlaneseq
    %v192 = vand.u32 %v191, 127
    %vm193 = vcmp.lt.s32.totalorder %v192, 32
    %v194 = vsel %vm193, 1, 0
    %v195 = vcvt.s32.f32 %v194
    %196 = vadd.xlane.f32.xlu0 %v188
    %v197 = vpop.xlane.xlu0 %196
    %v198 = vmul.f32 %v197, 0.03125
    %v199 = vsub.f32 %v188, %v198
    %v200 = vmul.f32 %v199, %v195
    %v201 = vmul.f32 %v200, %v200
    %202 = vadd.xlane.f32.xlu0 %v201
    %v203 = vpop.xlane.xlu0 %202
    %v204 = vmul.f32 %v203, 0.03125
    %v205 = vadd.f32 %v204, 1e-05
    %v206 = vrsqrt.pop %v205
    %v207 = vmul.f32 %v206, %v205
    %v208 = vmul.f32 %v207, %v206
    %v209 = vmul.f32 0.5, %v208
    %v210 = vsub.f32 1.5, %v209
    %v211 = vmul.f32 %v206, %v210
    %vm212 = vweird.f32 %v205
    %vm213 = vweird.f32 %v206
    %vm214 = vmor %vm212, %vm213
    %v215 = vsel %vm214, %v206, %v211
    %v216 = vmul.f32 %v199, %v215
    %v218 = vperm.slane %v163, 0
    %v220 = vmul.f32 %v216, %v218
    %v222 = vperm.slane %v164, 0
    %v224 = vadd.f32 %v220, %v222
    %v225 = vmax.f32 %v224, 0.0
    %v226 = vpack.c.bf16 %v225, %v225
    %v227 = vld [vmem:[#allocation6] sm:$0xf]
    %v228 = vld [vmem:[#allocation6 + $0x4] sm:$0xf]
    %v229 = vld [vmem:[#allocation6 + $0x8] sm:$0xf]
    %v230 = vld [vmem:[#allocation6 + $0xc] sm:$0xf]
    %v231 = vld [vmem:[#allocation6 + $0x10] sm:$0xf]
    %v232 = vld [vmem:[#allocation6 + $0x14] sm:$0xf]
    %v233 = vld [vmem:[#allocation6 + $0x18] sm:$0xf]
    %v234 = vld [vmem:[#allocation6 + $0x1c] sm:$0xf]
    %v235 = vld [vmem:[#allocation6 + $0x20] sm:$0xf]
    %v236 = vld [vmem:[#allocation6 + $0x24] sm:$0xf]
    %v237 = vld [vmem:[#allocation6 + $0x28] sm:$0xf]
    %v238 = vld [vmem:[#allocation6 + $0x2c] sm:$0xf]
    %v239 = vld [vmem:[#allocation6 + $0x30] sm:$0xf]
    %v240 = vld [vmem:[#allocation6 + $0x34] sm:$0xf]
    %v241 = vld [vmem:[#allocation6 + $0x38] sm:$0xf]
    %v242 = vld [vmem:[#allocation6 + $0x3c] sm:$0xf]
    %v243 = vld [vmem:[%s6] sm:$0x1]
    %v244 = vld [vmem:[#allocation7] sm:$0xf]
    %v245 = vld [vmem:[#allocation7 + $0x4] sm:$0xf]
    %v246 = vld [vmem:[#allocation7 + $0x8] sm:$0xf]
    %v247 = vld [vmem:[#allocation7 + $0xc] sm:$0xf]
    %v248 = vld [vmem:[#allocation7 + $0x10] sm:$0xf]
    %v249 = vld [vmem:[#allocation7 + $0x14] sm:$0xf]
    %v250 = vld [vmem:[#allocation7 + $0x18] sm:$0xf]
    %v251 = vld [vmem:[#allocation7 + $0x1c] sm:$0xf]
    %v252 = vld [vmem:[#allocation7 + $0x20] sm:$0xf]
    %v253 = vld [vmem:[#allocation7 + $0x24] sm:$0xf]
    %v254 = vld [vmem:[#allocation7 + $0x28] sm:$0xf]
    %v255 = vld [vmem:[#allocation7 + $0x2c] sm:$0xf]
    %v256 = vld [vmem:[#allocation7 + $0x30] sm:$0xf]
    %v257 = vld [vmem:[#allocation7 + $0x34] sm:$0xf]
    %v258 = vld [vmem:[#allocation7 + $0x38] sm:$0xf]
    %v259 = vld [vmem:[#allocation7 + $0x3c] sm:$0xf]
    %v260 = vld [vmem:[%s8] sm:$0x1]
    %v262 = vperm.slane %v243, 0
    %v280 = vunpack.c.l.b16 %v227
    %v281 = vunpack.c.l.b16 %v228
    %v282 = vunpack.c.l.b16 %v229
    %v283 = vunpack.c.l.b16 %v230
    %v284 = vunpack.c.l.b16 %v231
    %v285 = vunpack.c.l.b16 %v232
    %v286 = vunpack.c.l.b16 %v233
    %v287 = vunpack.c.l.b16 %v234
    %v288 = vunpack.c.l.b16 %v235
    %v289 = vunpack.c.l.b16 %v236
    %v290 = vunpack.c.l.b16 %v237
    %v291 = vunpack.c.l.b16 %v238
    %v292 = vunpack.c.l.b16 %v239
    %v293 = vunpack.c.l.b16 %v240
    %v294 = vunpack.c.l.b16 %v241
    %v295 = vunpack.c.l.b16 %v242
    %v296 = vpack.c.b16 %v281, %v280
    %v297 = vpack.c.b16 %v283, %v282
    %v298 = vpack.c.b16 %v285, %v284
    %v299 = vpack.c.b16 %v287, %v286
    %v300 = vpack.c.b16 %v289, %v288
    %v301 = vpack.c.b16 %v291, %v290
    %v302 = vpack.c.b16 %v293, %v292
    %v303 = vpack.c.b16 %v295, %v294
    %312 = vmatpush.bf16.msra.mxu0 %v303
    %313 = vmatpush.bf16.msra.mxu0 %v302
    %314 = vmatpush.bf16.msra.mxu0 %v301
    %315 = vmatpush.bf16.msra.mxu0 %v300
    %316 = vmatpush.bf16.msra.mxu0 %v299
    %317 = vmatpush.bf16.msra.mxu0 %v298
    %318 = vmatpush.bf16.msra.mxu0 %v297
    %319 = vmatpush.bf16.msra.mxu0 %v296
    %320 = vmatmul.bf16.gmra.mxu0 %v226
    %v321 = vpop.f32.mrf.mxu0
    %v322 = vadd.f32 %v262, %v321
    %v323 = vpop.f32.mrf.mxu0
    %324 = vdwg.mxu0
    %v325 = vmax.f32 %v322, 0.0
    %v326 = vpack.c.bf16 %v325, %v325
    %v328 = vperm.slane %v260, 0
    %v346 = vunpack.c.l.b16 %v244
    %v347 = vunpack.c.l.b16 %v245
    %v348 = vunpack.c.l.b16 %v246
    %v349 = vunpack.c.l.b16 %v247
    %v350 = vunpack.c.l.b16 %v248
    %v351 = vunpack.c.l.b16 %v249
    %v352 = vunpack.c.l.b16 %v250
    %v353 = vunpack.c.l.b16 %v251
    %v354 = vunpack.c.l.b16 %v252
    %v355 = vunpack.c.l.b16 %v253
    %v356 = vunpack.c.l.b16 %v254
    %v357 = vunpack.c.l.b16 %v255
    %v358 = vunpack.c.l.b16 %v256
    %v359 = vunpack.c.l.b16 %v257
    %v360 = vunpack.c.l.b16 %v258
    %v361 = vunpack.c.l.b16 %v259
    %v362 = vpack.c.b16 %v347, %v346
    %v363 = vpack.c.b16 %v349, %v348
    %v364 = vpack.c.b16 %v351, %v350
    %v365 = vpack.c.b16 %v353, %v352
    %v366 = vpack.c.b16 %v355, %v354
    %v367 = vpack.c.b16 %v357, %v356
    %v368 = vpack.c.b16 %v359, %v358
    %v369 = vpack.c.b16 %v361, %v360
    %378 = vmatpush.bf16.msra.mxu0 %v369
    %379 = vmatpush.bf16.msra.mxu0 %v368
    %380 = vmatpush.bf16.msra.mxu0 %v367
    %381 = vmatpush.bf16.msra.mxu0 %v366
    %382 = vmatpush.bf16.msra.mxu0 %v365
    %383 = vmatpush.bf16.msra.mxu0 %v364
    %384 = vmatpush.bf16.msra.mxu0 %v363
    %385 = vmatpush.bf16.msra.mxu0 %v362
    %386 = vmatmul.bf16.gmra.mxu0 %v326
    %v387 = vpop.f32.mrf.mxu0
    %v388 = vadd.f32 %v328, %v387
    %v389 = vpop.f32.mrf.mxu0
    %390 = vdwg.mxu0
    %391 = vadd.xlane.f32.xlu0 %v388
    %v392 = vpop.xlane.xlu0 %391
    %v393 = vmul.f32 %v392, 0.03125
    %v394 = vsub.f32 %v388, %v393
    %v395 = vmul.f32 %v394, %v195
    %v396 = vmul.f32 %v395, %v395
    %397 = vadd.xlane.f32.xlu0 %v396
    %v398 = vpop.xlane.xlu0 %397
    %v399 = vmul.f32 %v398, 0.03125
    %v400 = vadd.f32 %v399, 1e-05
    %v401 = vrsqrt.pop %v400
    %v402 = vmul.f32 %v401, %v400
    %v403 = vmul.f32 %v402, %v401
    %v404 = vmul.f32 0.5, %v403
    %v405 = vsub.f32 1.5, %v404
    %v406 = vmul.f32 %v401, %v405
    %vm407 = vweird.f32 %v400
    %vm408 = vweird.f32 %v401
    %vm409 = vmor %vm407, %vm408
    %v410 = vsel %vm409, %v401, %v406
    %v411 = vmul.f32 %v394, %v410
    %v412 = vpack.c.bf16 %v411, %v411
    %v413 = vld [vmem:[#allocation9] sm:$0xf]
    %v414 = vld [vmem:[#allocation9 + $0x4] sm:$0xf]
    %v415 = vld [vmem:[#allocation9 + $0x8] sm:$0xf]
    %v416 = vld [vmem:[#allocation9 + $0xc] sm:$0xf]
    %v417 = vld [vmem:[#allocation9 + $0x10] sm:$0xf]
    %v418 = vld [vmem:[#allocation9 + $0x14] sm:$0xf]
    %v419 = vld [vmem:[#allocation9 + $0x18] sm:$0xf]
    %v420 = vld [vmem:[#allocation9 + $0x1c] sm:$0xf]
    %v421 = vld [vmem:[#allocation9 + $0x20] sm:$0xf]
    %v422 = vld [vmem:[#allocation9 + $0x24] sm:$0xf]
    %v423 = vld [vmem:[#allocation9 + $0x28] sm:$0xf]
    %v424 = vld [vmem:[#allocation9 + $0x2c] sm:$0xf]
    %v425 = vld [vmem:[#allocation9 + $0x30] sm:$0xf]
    %v426 = vld [vmem:[#allocation9 + $0x34] sm:$0xf]
    %v427 = vld [vmem:[#allocation9 + $0x38] sm:$0xf]
    %v428 = vld [vmem:[#allocation9 + $0x3c] sm:$0xf]
    %v429 = vld [vmem:[%s10] sm:$0x1]
    %v430 = vld [vmem:[#allocation10] sm:$0xf]
    %v431 = vld [vmem:[#allocation10 + $0x4] sm:$0xf]
    %v432 = vld [vmem:[#allocation10 + $0x8] sm:$0xf]
    %v433 = vld [vmem:[#allocation10 + $0xc] sm:$0xf]
    %v434 = vld [vmem:[#allocation10 + $0x10] sm:$0xf]
    %v435 = vld [vmem:[#allocation10 + $0x14] sm:$0xf]
    %v436 = vld [vmem:[#allocation10 + $0x18] sm:$0xf]
    %v437 = vld [vmem:[#allocation10 + $0x1c] sm:$0xf]
    %v438 = vld [vmem:[#allocation10 + $0x20] sm:$0xf]
    %v439 = vld [vmem:[#allocation10 + $0x24] sm:$0xf]
    %v440 = vld [vmem:[#allocation10 + $0x28] sm:$0xf]
    %v441 = vld [vmem:[#allocation10 + $0x2c] sm:$0xf]
    %v442 = vld [vmem:[#allocation10 + $0x30] sm:$0xf]
    %v443 = vld [vmem:[#allocation10 + $0x34] sm:$0xf]
    %v444 = vld [vmem:[#allocation10 + $0x38] sm:$0xf]
    %v445 = vld [vmem:[#allocation10 + $0x3c] sm:$0xf]
    %v446 = vld [vmem:[%s12] sm:$0x1]
    %v448 = vperm.slane %v429, 0
    %v466 = vunpack.c.l.b16 %v413
    %v467 = vunpack.c.l.b16 %v414
    %v468 = vunpack.c.l.b16 %v415
    %v469 = vunpack.c.l.b16 %v416
    %v470 = vunpack.c.l.b16 %v417
    %v471 = vunpack.c.l.b16 %v418
    %v472 = vunpack.c.l.b16 %v419
    %v473 = vunpack.c.l.b16 %v420
    %v474 = vunpack.c.l.b16 %v421
    %v475 = vunpack.c.l.b16 %v422
    %v476 = vunpack.c.l.b16 %v423
    %v477 = vunpack.c.l.b16 %v424
    %v478 = vunpack.c.l.b16 %v425
    %v479 = vunpack.c.l.b16 %v426
    %v480 = vunpack.c.l.b16 %v427
    %v481 = vunpack.c.l.b16 %v428
    %v482 = vpack.c.b16 %v467, %v466
    %v483 = vpack.c.b16 %v469, %v468
    %v484 = vpack.c.b16 %v471, %v470
    %v485 = vpack.c.b16 %v473, %v472
    %v486 = vpack.c.b16 %v475, %v474
    %v487 = vpack.c.b16 %v477, %v476
    %v488 = vpack.c.b16 %v479, %v478
    %v489 = vpack.c.b16 %v481, %v480
    %498 = vmatpush.bf16.msra.mxu0 %v489
    %499 = vmatpush.bf16.msra.mxu0 %v488
    %500 = vmatpush.bf16.msra.mxu0 %v487
    %501 = vmatpush.bf16.msra.mxu0 %v486
    %502 = vmatpush.bf16.msra.mxu0 %v485
    %503 = vmatpush.bf16.msra.mxu0 %v484
    %504 = vmatpush.bf16.msra.mxu0 %v483
    %505 = vmatpush.bf16.msra.mxu0 %v482
    %506 = vmatmul.bf16.gmra.mxu0 %v412
    %v507 = vpop.f32.mrf.mxu0
    %v508 = vadd.f32 %v448, %v507
    %v509 = vpop.f32.mrf.mxu0
    %510 = vdwg.mxu0
    %v511 = vmax.f32 %v508, 0.0
    %v512 = vpack.c.bf16 %v511, %v511
    %v514 = vperm.slane %v446, 0
    %v532 = vunpack.c.l.b16 %v430
    %v533 = vunpack.c.l.b16 %v431
    %v534 = vunpack.c.l.b16 %v432
    %v535 = vunpack.c.l.b16 %v433
    %v536 = vunpack.c.l.b16 %v434
    %v537 = vunpack.c.l.b16 %v435
    %v538 = vunpack.c.l.b16 %v436
    %v539 = vunpack.c.l.b16 %v437
    %v540 = vunpack.c.l.b16 %v438
    %v541 = vunpack.c.l.b16 %v439
    %v542 = vunpack.c.l.b16 %v440
    %v543 = vunpack.c.l.b16 %v441
    %v544 = vunpack.c.l.b16 %v442
    %v545 = vunpack.c.l.b16 %v443
    %v546 = vunpack.c.l.b16 %v444
    %v547 = vunpack.c.l.b16 %v445
    %v548 = vpack.c.b16 %v533, %v532
    %v549 = vpack.c.b16 %v535, %v534
    %v550 = vpack.c.b16 %v537, %v536
    %v551 = vpack.c.b16 %v539, %v538
    %v552 = vpack.c.b16 %v541, %v540
    %v553 = vpack.c.b16 %v543, %v542
    %v554 = vpack.c.b16 %v545, %v544
    %v555 = vpack.c.b16 %v547, %v546
    %564 = vmatpush.bf16.msra.mxu0 %v555
    %565 = vmatpush.bf16.msra.mxu0 %v554
    %566 = vmatpush.bf16.msra.mxu0 %v553
    %567 = vmatpush.bf16.msra.mxu0 %v552
    %568 = vmatpush.bf16.msra.mxu0 %v551
    %569 = vmatpush.bf16.msra.mxu0 %v550
    %570 = vmatpush.bf16.msra.mxu0 %v549
    %571 = vmatpush.bf16.msra.mxu0 %v548
    %572 = vmatmul.bf16.gmra.mxu0 %v512
    %v573 = vpop.f32.mrf.mxu0
    %v574 = vadd.f32 %v514, %v573
    %v575 = vpop.f32.mrf.mxu0
    %576 = vdwg.mxu0
    %577 = vadd.xlane.f32.xlu0 %v574
    %v578 = vpop.xlane.xlu0 %577
    %v579 = vmul.f32 %v578, 0.03125
    %v580 = vsub.f32 %v574, %v579
    %v581 = vmul.f32 %v580, %v195
    %v582 = vmul.f32 %v581, %v581
    %583 = vadd.xlane.f32.xlu0 %v582
    %v584 = vpop.xlane.xlu0 %583
    %v585 = vmul.f32 %v584, 0.03125
    %v586 = vadd.f32 %v585, 1e-05
    %v587 = vrsqrt.pop %v586
    %v588 = vmul.f32 %v587, %v586
    %v589 = vmul.f32 %v588, %v587
    %v590 = vmul.f32 0.5, %v589
    %v591 = vsub.f32 1.5, %v590
    %v592 = vmul.f32 %v587, %v591
    %vm593 = vweird.f32 %v586
    %vm594 = vweird.f32 %v587
    %vm595 = vmor %vm593, %vm594
    %v596 = vsel %vm595, %v587, %v592
    %v597 = vmul.f32 %v580, %v596
    %v598 = vpack.c.bf16 %v597, %v597
    %v599 = vld [vmem:[#allocation12] sm:$0xf]
    %v600 = vld [vmem:[#allocation12 + $0x4] sm:$0xf]
    %v601 = vld [vmem:[#allocation12 + $0x8] sm:$0xf]
    %v602 = vld [vmem:[#allocation12 + $0xc] sm:$0xf]
    %v603 = vld [vmem:[#allocation12 + $0x10] sm:$0xf]
    %v604 = vld [vmem:[#allocation12 + $0x14] sm:$0xf]
    %v605 = vld [vmem:[#allocation12 + $0x18] sm:$0xf]
    %v606 = vld [vmem:[#allocation12 + $0x1c] sm:$0xf]
    %v607 = vld [vmem:[#allocation12 + $0x20] sm:$0xf]
    %v608 = vld [vmem:[#allocation12 + $0x24] sm:$0xf]
    %v609 = vld [vmem:[#allocation12 + $0x28] sm:$0xf]
    %v610 = vld [vmem:[#allocation12 + $0x2c] sm:$0xf]
    %v611 = vld [vmem:[#allocation12 + $0x30] sm:$0xf]
    %v612 = vld [vmem:[#allocation12 + $0x34] sm:$0xf]
    %v613 = vld [vmem:[#allocation12 + $0x38] sm:$0xf]
    %v614 = vld [vmem:[#allocation12 + $0x3c] sm:$0xf]
    %v615 = vld [vmem:[%s14] sm:$0x1]
    %v617 = vperm.slane %v615, 0
    %v635 = vunpack.c.l.b16 %v599
    %v636 = vunpack.c.l.b16 %v600
    %v637 = vunpack.c.l.b16 %v601
    %v638 = vunpack.c.l.b16 %v602
    %v639 = vunpack.c.l.b16 %v603
    %v640 = vunpack.c.l.b16 %v604
    %v641 = vunpack.c.l.b16 %v605
    %v642 = vunpack.c.l.b16 %v606
    %v643 = vunpack.c.l.b16 %v607
    %v644 = vunpack.c.l.b16 %v608
    %v645 = vunpack.c.l.b16 %v609
    %v646 = vunpack.c.l.b16 %v610
    %v647 = vunpack.c.l.b16 %v611
    %v648 = vunpack.c.l.b16 %v612
    %v649 = vunpack.c.l.b16 %v613
    %v650 = vunpack.c.l.b16 %v614
    %v651 = vpack.c.b16 %v636, %v635
    %v652 = vpack.c.b16 %v638, %v637
    %v653 = vpack.c.b16 %v640, %v639
    %v654 = vpack.c.b16 %v642, %v641
    %v655 = vpack.c.b16 %v644, %v643
    %v656 = vpack.c.b16 %v646, %v645
    %v657 = vpack.c.b16 %v648, %v647
    %v658 = vpack.c.b16 %v650, %v649
    %667 = vmatpush.bf16.msra.mxu0 %v658
    %668 = vmatpush.bf16.msra.mxu0 %v657
    %669 = vmatpush.bf16.msra.mxu0 %v656
    %670 = vmatpush.bf16.msra.mxu0 %v655
    %671 = vmatpush.bf16.msra.mxu0 %v654
    %672 = vmatpush.bf16.msra.mxu0 %v653
    %673 = vmatpush.bf16.msra.mxu0 %v652
    %674 = vmatpush.bf16.msra.mxu0 %v651
    %675 = vmatmul.bf16.gmra.mxu0 %v598
    %v676 = vpop.f32.mrf.mxu0
    %v677 = vadd.f32 %v617, %v676
    %v678 = vpop.f32.mrf.mxu0
    %679 = vdwg.mxu0
    %v680 = vpack.c.bf16 %v677, %v677
    %681 = vst [vmem:[%s15] sm:$0xf] %v680
    // Predicated region
    $region90: #{tabular_transformer_forward.1} parent=1 // pred_check
      _
    $region91: #{tabular_transformer_forward.1} parent=1 // pred_check_branch
      %683 = sbr.rel (0) target = $region93
    $region92: #{tabular_transformer_forward.1} parent=1 // pred_region
      _
    $region93: #{tabular_transformer_forward.1} parent=1 // pred_fallthru
      _
    // Predicated region
    $region94: #{tabular_transformer_forward.1} parent=1 // pred_check
      _
    $region95: #{tabular_transformer_forward.1} parent=1 // pred_check_branch
      %685 = sbr.rel (0) target = $region97
    $region96: #{tabular_transformer_forward.1} parent=1 // pred_region
      _
    $region97: #{tabular_transformer_forward.1} parent=1 // pred_fallthru
      _
    %686 = vsyncpa [#allocation3], 1
    %687 = vsyncpa [#allocation5], 1
    %688 = vsyncpa [#allocation8], 1
    %689 = vsyncpa [#allocation11], 1

</llo_original>
